<compile_context>
chip_gen: v6e
topology: v6e:2x2x1
jax: 0.10.0
libtpu: 0.0.40
codegen_flags: <defaults>
</compile_context>

<pallas_src>
import jax
import jax.numpy as jnp
from jax.experimental import pallas as pl
from jax.experimental.pallas import tpu as pltpu


def conv_mm_kernel(p_ref, w_ref, b_ref, o_ref):
    # p_ref: (B, KP, HoWo)   bf16  im2col patches, K zero-padded to KP (mult of 128)
    # w_ref: (Cout, KP)      bf16  flattened conv weights (K zero-padded)
    # b_ref: (Cout, 1)       f32   bias column
    # o_ref: (B, Cout, HoWo) f32   relu(W @ P + b) -- already NCHW-ordered
    w = w_ref[...]
    b = b_ref[...]
    for bi in range(p_ref.shape[0]):  # static, tiny batch -> unrolled
        acc = jnp.dot(w, p_ref[bi], preferred_element_type=jnp.float32)  # (Cout, HoWo)
        o_ref[bi] = jnp.maximum(acc + b, 0.0)


@jax.jit
def conv_layer_forward(x, weight, bias):
    """Forward of ConvLayer: relu(conv2d(x, weight, bias, stride=1, valid)).

    x:      (B, Cin, H, W)      float32
    weight: (Cout, Cin, KH, KW) float32
    bias:   (Cout,)             float32
    Returns (B, Cout, Ho, Wo)   float32, matching the PyTorch module.
    """
    B, Cin, H, W = x.shape
    Cout, _, KH, KW = weight.shape
    Ho, Wo = H - KH + 1, W - KW + 1
    HoWo = Ho * Wo
    K = Cin * KH * KW
    KP = ((K + 127) // 128) * 128  # aligned contraction dim (zeros are inert)

    # One fused im2col op: (B, Cin*KH*KW, Ho, Wo); tap order (c, kh, kw)
    # matches weight.reshape(Cout, Cin*KH*KW) flattening of OIHW.
    patches = jax.lax.conv_general_dilated_patches(
        x, (KH, KW), (1, 1), "VALID")                      # (B, K, Ho, Wo)
    patches = patches.reshape(B, K, HoWo).astype(jnp.bfloat16)
    patches = jnp.pad(patches, ((0, 0), (0, KP - K), (0, 0)))   # (B, KP, HoWo)

    w_mat = jnp.pad(weight.reshape(Cout, K).astype(jnp.bfloat16),
                    ((0, 0), (0, KP - K)))                  # (Cout, KP)
    b_col = bias.reshape(Cout, 1).astype(jnp.float32)       # (Cout, 1)

    out = pl.pallas_call(
        conv_mm_kernel,
        out_shape=jax.ShapeDtypeStruct((B, Cout, HoWo), jnp.float32),
        grid_spec=pltpu.PrefetchScalarGridSpec(
            num_scalar_prefetch=0,
            grid=(1,),  # single step: everything resident in VMEM
            in_specs=[
                pl.BlockSpec((B, KP, HoWo), lambda i: (0, 0, 0)),
                pl.BlockSpec((Cout, KP), lambda i: (0, 0)),
                pl.BlockSpec((Cout, 1), lambda i: (0, 0)),
            ],
            out_specs=pl.BlockSpec((B, Cout, HoWo), lambda i: (0, 0, 0)),
        ),
        compiler_params=pltpu.CompilerParams(
            dimension_semantics=("arbitrary",)),
    )(patches, w_mat, b_col)

    # (B, Cout, Ho*Wo) is already NCHW order -> free reshape, no transpose.
    return out.reshape(B, Cout, Ho, Wo)


def conv_layer_reference(x, weight, bias):
    """Pure-JAX transcription of the PyTorch forward for verification."""
    out = jax.lax.conv_general_dilated(
        x, weight, window_strides=(1, 1), padding="VALID",
        dimension_numbers=("NCHW", "OIHW", "NCHW"),
        precision=jax.lax.Precision.HIGHEST)
    out = out + bias.reshape(1, -1, 1, 1)
    return jnp.maximum(out, 0.0)


if __name__ == "__main__":
    # Small shapes consistent with ConvLayer(in_channels=1, out_channels=256):
    # 16x16 single-channel input -> 8x8 spatial output after a 9x9 valid conv.
    B, Cin, H, W = 2, 1, 16, 16
    Cout, KH, KW = 256, 9, 9

    key = jax.random.PRNGKey(0)
    kx, kw_, kb = jax.random.split(key, 3)
    x = jax.random.normal(kx, (B, Cin, H, W), dtype=jnp.float32)
    # Deterministic stand-ins for nn.Conv2d's weight/bias parameters.
    fan_in = Cin * KH * KW
    weight = jax.random.normal(kw_, (Cout, Cin, KH, KW),
                               dtype=jnp.float32) / jnp.sqrt(float(fan_in))
    bias = 0.1 * jax.random.normal(kb, (Cout,), dtype=jnp.float32)

    y = jax.block_until_ready(conv_layer_forward(x, weight, bias))
    y_ref = jax.block_until_ready(conv_layer_reference(x, weight, bias))

    assert y.shape == (B, Cout, H - KH + 1, W - KW + 1), y.shape
    max_err = float(jnp.max(jnp.abs(y - y_ref)))
    assert jnp.allclose(y, y_ref, atol=2e-2, rtol=2e-2), max_err

    print("KERNEL_OK")
</pallas_src>

<mosaic_0001>
module attributes {stable_mosaic.version = 11 : i64} {
  func.func @conv_mm_kernel(%arg0: i32, %arg1: memref<2x128x64xbf16, #tpu.memory_space<vmem>>, %arg2: memref<256x128xbf16, #tpu.memory_space<vmem>>, %arg3: memref<256x1xf32, #tpu.memory_space<vmem>>, %arg4: memref<2x256x64xf32, #tpu.memory_space<vmem>>) attributes {dimension_semantics = [#tpu.dimension_semantics<arbitrary>], iteration_bounds = array<i64: 1>, scalar_prefetch = 0 : i64, scratch_operands = 0 : i64, tpu.core_type = #tpu.core_type<tc>, window_params = [{pipeline_mode = #tpu.pipeline_mode<synchronous>, transform_indices = @transform_0, window_bounds = array<i64: 2, 128, 64>}, {pipeline_mode = #tpu.pipeline_mode<synchronous>, transform_indices = @transform_1, window_bounds = array<i64: 256, 128>}, {pipeline_mode = #tpu.pipeline_mode<synchronous>, transform_indices = @transform_2, window_bounds = array<i64: 256, 1>}, {pipeline_mode = #tpu.pipeline_mode<synchronous>, transform_indices = @transform_3, window_bounds = array<i64: 2, 256, 64>}]} {
    %c0 = arith.constant 0 : index
    %c0_0 = arith.constant 0 : index
    %0 = vector.load %arg2[%c0, %c0_0] : memref<256x128xbf16, #tpu.memory_space<vmem>>, vector<256x128xbf16>
    %c0_1 = arith.constant 0 : index
    %c0_2 = arith.constant 0 : index
    %1 = vector.load %arg3[%c0_1, %c0_2] : memref<256x1xf32, #tpu.memory_space<vmem>>, vector<256x1xf32>
    %c0_3 = arith.constant 0 : index
    %c0_4 = arith.constant 0 : index
    %c0_5 = arith.constant 0 : index
    %2 = vector.load %arg1[%c0_3, %c0_4, %c0_5] : memref<2x128x64xbf16, #tpu.memory_space<vmem>>, vector<1x128x64xbf16>
    %3 = vector.shape_cast %2 : vector<1x128x64xbf16> to vector<128x64xbf16>
    %cst = arith.constant dense<0.000000e+00> : vector<256x64xf32>
    %4 = tpu.matmul %0, %3, %cst {dimension_numbers = #tpu.dot_dimension_numbers<[1], [0], [0], [1], [0, 0, 1, 1], [], []>} : vector<256x128xbf16>, vector<128x64xbf16>, vector<256x64xf32> -> vector<256x64xf32>
    %5 = vector.broadcast %1 : vector<256x1xf32> to vector<256x64xf32>
    %6 = arith.addf %4, %5 : vector<256x64xf32>
    %cst_6 = arith.constant 0.000000e+00 : f32
    %7 = vector.broadcast %cst_6 : f32 to vector<256x64xf32>
    %8 = arith.maximumf %6, %7 : vector<256x64xf32>
    %c0_7 = arith.constant 0 : index
    %c0_8 = arith.constant 0 : index
    %c0_9 = arith.constant 0 : index
    %9 = vector.load %arg4[%c0_7, %c0_8, %c0_9] : memref<2x256x64xf32, #tpu.memory_space<vmem>>, vector<1x256x64xf32>
    %10 = vector.shape_cast %9 : vector<1x256x64xf32> to vector<256x64xf32>
    %11 = vector.shape_cast %8 : vector<256x64xf32> to vector<1x256x64xf32>
    tpu.vector_store %arg4[%c0_7, %c0_8, %c0_9], %11 {strides = array<i32>} : memref<2x256x64xf32, #tpu.memory_space<vmem>>, vector<1x256x64xf32>,
    %c1 = arith.constant 1 : index
    %c0_10 = arith.constant 0 : index
    %c0_11 = arith.constant 0 : index
    %12 = vector.load %arg1[%c1, %c0_10, %c0_11] : memref<2x128x64xbf16, #tpu.memory_space<vmem>>, vector<1x128x64xbf16>
    %13 = vector.shape_cast %12 : vector<1x128x64xbf16> to vector<128x64xbf16>
    %cst_12 = arith.constant dense<0.000000e+00> : vector<256x64xf32>
    %14 = tpu.matmul %0, %13, %cst_12 {dimension_numbers = #tpu.dot_dimension_numbers<[1], [0], [0], [1], [0, 0, 1, 1], [], []>} : vector<256x128xbf16>, vector<128x64xbf16>, vector<256x64xf32> -> vector<256x64xf32>
    %15 = vector.broadcast %1 : vector<256x1xf32> to vector<256x64xf32>
    %16 = arith.addf %14, %15 : vector<256x64xf32>
    %cst_13 = arith.constant 0.000000e+00 : f32
    %17 = vector.broadcast %cst_13 : f32 to vector<256x64xf32>
    %18 = arith.maximumf %16, %17 : vector<256x64xf32>
    %c1_14 = arith.constant 1 : index
    %c0_15 = arith.constant 0 : index
    %c0_16 = arith.constant 0 : index
    %19 = vector.load %arg4[%c1_14, %c0_15, %c0_16] : memref<2x256x64xf32, #tpu.memory_space<vmem>>, vector<1x256x64xf32>
    %20 = vector.shape_cast %19 : vector<1x256x64xf32> to vector<256x64xf32>
    %21 = vector.shape_cast %18 : vector<256x64xf32> to vector<1x256x64xf32>
    tpu.vector_store %arg4[%c1_14, %c0_15, %c0_16], %21 {strides = array<i32>} : memref<2x256x64xf32, #tpu.memory_space<vmem>>, vector<1x256x64xf32>,
    return
  }
  func.func @transform_0(%arg0: i32) -> (i32, i32, i32) {
    %c0_i32 = arith.constant 0 : i32
    %c0_i32_0 = arith.constant 0 : i32
    %c0_i32_1 = arith.constant 0 : i32
    %c0_i32_2 = arith.constant 0 : i32
    return %c0_i32, %c0_i32_0, %c0_i32_1 : i32, i32, i32
  }
  func.func @transform_1(%arg0: i32) -> (i32, i32) {
    %c0_i32 = arith.constant 0 : i32
    %c0_i32_0 = arith.constant 0 : i32
    %c0_i32_1 = arith.constant 0 : i32
    return %c0_i32, %c0_i32_0 : i32, i32
  }
  func.func @transform_2(%arg0: i32) -> (i32, i32) {
    %c0_i32 = arith.constant 0 : i32
    %c0_i32_0 = arith.constant 0 : i32
    %c0_i32_1 = arith.constant 0 : i32
    return %c0_i32, %c0_i32_0 : i32, i32
  }
  func.func @transform_3(%arg0: i32) -> (i32, i32, i32) {
    %c0_i32 = arith.constant 0 : i32
    %c0_i32_0 = arith.constant 0 : i32
    %c0_i32_1 = arith.constant 0 : i32
    %c0_i32_2 = arith.constant 0 : i32
    return %c0_i32, %c0_i32_0, %c0_i32_1 : i32, i32, i32
  }
}

</mosaic_0001>

<llo_original>
// kernel: conv_layer_forward.1
$region0: #{conv_layer_forward.1}
  #allocation0 [shape = 'u32[]', space=smem, size = 0x4, offset = 0x4, fixed_abs, tag = 'smem constant byte address 0x4 - core index']
  #allocation1 [shape = 'u32[144,128]{1,0:T(1,128)}', space=vmem, size = 0x12000, scoped, tag = 'internal scratch']
  %s0 = inlined_call_operand.vmem [shape: bf16[2,128,64], index: 0, kind: input, shape index: {}]
  %s1 = inlined_call_operand.vmem [shape: bf16[256,128], index: 1, kind: input, shape index: {}]
  %s2 = inlined_call_operand.vmem [shape: f32[256,1], index: 2, kind: input, shape index: {}]
  %s3 = inlined_call_operand.vmem [shape: f32[2,256,64], index: 3, kind: output, shape index: {}]
  %s4 = sld [smem:[#allocation0]]
  $region22: #{conv_layer_forward.1} parent=0
    _
  %s6 = ssub.s32 1, %s4
  %s7 = scalar_select 0, %s6, %s4
  // Predicated region
  $region2: #{conv_layer_forward.1} parent=0 // pred_check
    _
  $region3: #{conv_layer_forward.1} parent=0 // pred_check_branch
    %9 = sbr.rel (0) target = $region5
  $region4: #{conv_layer_forward.1} parent=0 // pred_region
    _
  $region5: #{conv_layer_forward.1} parent=0 // pred_fallthru
    _
  // Predicated region
  $region6: #{conv_layer_forward.1} parent=0 // pred_check
    _
  $region7: #{conv_layer_forward.1} parent=0 // pred_check_branch
    %11 = sbr.rel (0) target = $region9
  $region8: #{conv_layer_forward.1} parent=0 // pred_region
    _
  $region9: #{conv_layer_forward.1} parent=0 // pred_fallthru
    _
  // Predicated region
  $region10: #{conv_layer_forward.1} parent=0 // pred_check
    _
  $region11: #{conv_layer_forward.1} parent=0 // pred_check_branch
    %13 = sbr.rel (0) target = $region13
  $region12: #{conv_layer_forward.1} parent=0 // pred_region
    _
  $region13: #{conv_layer_forward.1} parent=0 // pred_fallthru
    _
  %v15 = vld [vmem:[%s1] sm:$0xf]
  %v16 = vld [vmem:[%s1 + $0x4] sm:$0xf]
  %v17 = vld [vmem:[%s1 + $0x8] sm:$0xf]
  %v18 = vld [vmem:[%s1 + $0xc] sm:$0xf]
  %v19 = vld [vmem:[%s1 + $0x10] sm:$0xf]
  %v20 = vld [vmem:[%s1 + $0x14] sm:$0xf]
  %v21 = vld [vmem:[%s1 + $0x18] sm:$0xf]
  %v22 = vld [vmem:[%s1 + $0x1c] sm:$0xf]
  %v23 = vld [vmem:[%s1 + $0x20] sm:$0xf]
  %v24 = vld [vmem:[%s1 + $0x24] sm:$0xf]
  %v25 = vld [vmem:[%s1 + $0x28] sm:$0xf]
  %v26 = vld [vmem:[%s1 + $0x2c] sm:$0xf]
  %v27 = vld [vmem:[%s1 + $0x30] sm:$0xf]
  %v28 = vld [vmem:[%s1 + $0x34] sm:$0xf]
  %v29 = vld [vmem:[%s1 + $0x38] sm:$0xf]
  %v30 = vld [vmem:[%s1 + $0x3c] sm:$0xf]
  %v31 = vld [vmem:[%s1 + $0x40] sm:$0xf]
  %v32 = vld [vmem:[%s1 + $0x44] sm:$0xf]
  %v33 = vld [vmem:[%s1 + $0x48] sm:$0xf]
  %v34 = vld [vmem:[%s1 + $0x4c] sm:$0xf]
  %v35 = vld [vmem:[%s1 + $0x50] sm:$0xf]
  %v36 = vld [vmem:[%s1 + $0x54] sm:$0xf]
  %v37 = vld [vmem:[%s1 + $0x58] sm:$0xf]
  %v38 = vld [vmem:[%s1 + $0x5c] sm:$0xf]
  %v39 = vld [vmem:[%s1 + $0x60] sm:$0xf]
  %v40 = vld [vmem:[%s1 + $0x64] sm:$0xf]
  %v41 = vld [vmem:[%s1 + $0x68] sm:$0xf]
  %v42 = vld [vmem:[%s1 + $0x6c] sm:$0xf]
  %v43 = vld [vmem:[%s1 + $0x70] sm:$0xf]
  %v44 = vld [vmem:[%s1 + $0x74] sm:$0xf]
  %v45 = vld [vmem:[%s1 + $0x78] sm:$0xf]
  %v46 = vld [vmem:[%s1 + $0x7c] sm:$0xf]
  %v47 = vld [vmem:[%s2] sm:$0xff]
  %v48 = vld [vmem:[%s2 + $0x8] sm:$0xff]
  %v49 = vld [vmem:[%s2 + $0x10] sm:$0xff]
  %v50 = vld [vmem:[%s2 + $0x18] sm:$0xff]
  %v51 = vld [vmem:[%s2 + $0x20] sm:$0xff]
  %v52 = vld [vmem:[%s2 + $0x28] sm:$0xff]
  %v53 = vld [vmem:[%s2 + $0x30] sm:$0xff]
  %v54 = vld [vmem:[%s2 + $0x38] sm:$0xff]
  %v55 = vld [vmem:[%s2 + $0x40] sm:$0xff]
  %v56 = vld [vmem:[%s2 + $0x48] sm:$0xff]
  %v57 = vld [vmem:[%s2 + $0x50] sm:$0xff]
  %v58 = vld [vmem:[%s2 + $0x58] sm:$0xff]
  %v59 = vld [vmem:[%s2 + $0x60] sm:$0xff]
  %v60 = vld [vmem:[%s2 + $0x68] sm:$0xff]
  %v61 = vld [vmem:[%s2 + $0x70] sm:$0xff]
  %v62 = vld [vmem:[%s2 + $0x78] sm:$0xff]
  %v63 = vld [vmem:[%s2 + $0x80] sm:$0xff]
  %v64 = vld [vmem:[%s2 + $0x88] sm:$0xff]
  %v65 = vld [vmem:[%s2 + $0x90] sm:$0xff]
  %v66 = vld [vmem:[%s2 + $0x98] sm:$0xff]
  %v67 = vld [vmem:[%s2 + $0xa0] sm:$0xff]
  %v68 = vld [vmem:[%s2 + $0xa8] sm:$0xff]
  %v69 = vld [vmem:[%s2 + $0xb0] sm:$0xff]
  %v70 = vld [vmem:[%s2 + $0xb8] sm:$0xff]
  %v71 = vld [vmem:[%s2 + $0xc0] sm:$0xff]
  %v72 = vld [vmem:[%s2 + $0xc8] sm:$0xff]
  %v73 = vld [vmem:[%s2 + $0xd0] sm:$0xff]
  %v74 = vld [vmem:[%s2 + $0xd8] sm:$0xff]
  %v75 = vld [vmem:[%s2 + $0xe0] sm:$0xff]
  %v76 = vld [vmem:[%s2 + $0xe8] sm:$0xff]
  %v77 = vld [vmem:[%s2 + $0xf0] sm:$0xff]
  %v78 = vld [vmem:[%s2 + $0xf8] sm:$0xff]
  %v79 = vld [vmem:[%s0] sm:$0xf]
  %v80 = vld [vmem:[%s0 + $0x4] sm:$0xf]
  %v81 = vld [vmem:[%s0 + $0x8] sm:$0xf]
  %v82 = vld [vmem:[%s0 + $0xc] sm:$0xf]
  %v83 = vld [vmem:[%s0 + $0x10] sm:$0xf]
  %v84 = vld [vmem:[%s0 + $0x14] sm:$0xf]
  %v85 = vld [vmem:[%s0 + $0x18] sm:$0xf]
  %v86 = vld [vmem:[%s0 + $0x1c] sm:$0xf]
  %v87 = vld [vmem:[%s0 + $0x20] sm:$0xf]
  %v88 = vld [vmem:[%s0 + $0x24] sm:$0xf]
  %v89 = vld [vmem:[%s0 + $0x28] sm:$0xf]
  %v90 = vld [vmem:[%s0 + $0x2c] sm:$0xf]
  %v91 = vld [vmem:[%s0 + $0x30] sm:$0xf]
  %v92 = vld [vmem:[%s0 + $0x34] sm:$0xf]
  %v93 = vld [vmem:[%s0 + $0x38] sm:$0xf]
  %v94 = vld [vmem:[%s0 + $0x3c] sm:$0xf]
  %96 = vset.pattern.permute.xlu0 0
  %97 = vperm.xlu0 %96, %v47
  %v98 = vpop.permute.xlu0 %97
  %101 = vset.pattern.permute.xlu0 0
  %102 = vperm.xlu0 %101, %v48
  %v103 = vpop.permute.xlu0 %102
  %106 = vset.pattern.permute.xlu0 0
  %107 = vperm.xlu0 %106, %v49
  %v108 = vpop.permute.xlu0 %107
  %111 = vset.pattern.permute.xlu0 0
  %112 = vperm.xlu0 %111, %v50
  %v113 = vpop.permute.xlu0 %112
  %116 = vset.pattern.permute.xlu0 0
  %117 = vperm.xlu0 %116, %v51
  %v118 = vpop.permute.xlu0 %117
  %121 = vset.pattern.permute.xlu0 0
  %122 = vperm.xlu0 %121, %v52
  %v123 = vpop.permute.xlu0 %122
  %126 = vset.pattern.permute.xlu0 0
  %127 = vperm.xlu0 %126, %v53
  %v128 = vpop.permute.xlu0 %127
  %131 = vset.pattern.permute.xlu0 0
  %132 = vperm.xlu0 %131, %v54
  %v133 = vpop.permute.xlu0 %132
  %136 = vset.pattern.permute.xlu0 0
  %137 = vperm.xlu0 %136, %v55
  %v138 = vpop.permute.xlu0 %137
  %141 = vset.pattern.permute.xlu0 0
  %142 = vperm.xlu0 %141, %v56
  %v143 = vpop.permute.xlu0 %142
  %146 = vset.pattern.permute.xlu0 0
  %147 = vperm.xlu0 %146, %v57
  %v148 = vpop.permute.xlu0 %147
  %151 = vset.pattern.permute.xlu0 0
  %152 = vperm.xlu0 %151, %v58
  %v153 = vpop.permute.xlu0 %152
  %156 = vset.pattern.permute.xlu0 0
  %157 = vperm.xlu0 %156, %v59
  %v158 = vpop.permute.xlu0 %157
  %161 = vset.pattern.permute.xlu0 0
  %162 = vperm.xlu0 %161, %v60
  %v163 = vpop.permute.xlu0 %162
  %166 = vset.pattern.permute.xlu0 0
  %167 = vperm.xlu0 %166, %v61
  %v168 = vpop.permute.xlu0 %167
  %171 = vset.pattern.permute.xlu0 0
  %172 = vperm.xlu0 %171, %v62
  %v173 = vpop.permute.xlu0 %172
  %176 = vset.pattern.permute.xlu0 0
  %177 = vperm.xlu0 %176, %v63
  %v178 = vpop.permute.xlu0 %177
  %181 = vset.pattern.permute.xlu0 0
  %182 = vperm.xlu0 %181, %v64
  %v183 = vpop.permute.xlu0 %182
  %186 = vset.pattern.permute.xlu0 0
  %187 = vperm.xlu0 %186, %v65
  %v188 = vpop.permute.xlu0 %187
  %191 = vset.pattern.permute.xlu0 0
  %192 = vperm.xlu0 %191, %v66
  %v193 = vpop.permute.xlu0 %192
  %196 = vset.pattern.permute.xlu0 0
  %197 = vperm.xlu0 %196, %v67
  %v198 = vpop.permute.xlu0 %197
  %201 = vset.pattern.permute.xlu0 0
  %202 = vperm.xlu0 %201, %v68
  %v203 = vpop.permute.xlu0 %202
  %206 = vset.pattern.permute.xlu0 0
  %207 = vperm.xlu0 %206, %v69
  %v208 = vpop.permute.xlu0 %207
  %211 = vset.pattern.permute.xlu0 0
  %212 = vperm.xlu0 %211, %v70
  %v213 = vpop.permute.xlu0 %212
  %216 = vset.pattern.permute.xlu0 0
  %217 = vperm.xlu0 %216, %v71
  %v218 = vpop.permute.xlu0 %217
  %221 = vset.pattern.permute.xlu0 0
  %222 = vperm.xlu0 %221, %v72
  %v223 = vpop.permute.xlu0 %222
  %226 = vset.pattern.permute.xlu0 0
  %227 = vperm.xlu0 %226, %v73
  %v228 = vpop.permute.xlu0 %227
  %231 = vset.pattern.permute.xlu0 0
  %232 = vperm.xlu0 %231, %v74
  %v233 = vpop.permute.xlu0 %232
  %236 = vset.pattern.permute.xlu0 0
  %237 = vperm.xlu0 %236, %v75
  %v238 = vpop.permute.xlu0 %237
  %241 = vset.pattern.permute.xlu0 0
  %242 = vperm.xlu0 %241, %v76
  %v243 = vpop.permute.xlu0 %242
  %246 = vset.pattern.permute.xlu0 0
  %247 = vperm.xlu0 %246, %v77
  %v248 = vpop.permute.xlu0 %247
  %251 = vset.pattern.permute.xlu0 0
  %252 = vperm.xlu0 %251, %v78
  %v253 = vpop.permute.xlu0 %252
  %v287 = vunpack.c.l.b16 %v15
  %v288 = vunpack.c.l.b16 %v16
  %v289 = vunpack.c.l.b16 %v17
  %v290 = vunpack.c.l.b16 %v18
  %v291 = vunpack.c.l.b16 %v19
  %v292 = vunpack.c.l.b16 %v20
  %v293 = vunpack.c.l.b16 %v21
  %v294 = vunpack.c.l.b16 %v22
  %v295 = vunpack.c.l.b16 %v23
  %v296 = vunpack.c.l.b16 %v24
  %v297 = vunpack.c.l.b16 %v25
  %v298 = vunpack.c.l.b16 %v26
  %v299 = vunpack.c.l.b16 %v27
  %v300 = vunpack.c.l.b16 %v28
  %v301 = vunpack.c.l.b16 %v29
  %v302 = vunpack.c.l.b16 %v30
  %v303 = vunpack.c.l.b16 %v31
  %v304 = vunpack.c.l.b16 %v32
  %v305 = vunpack.c.l.b16 %v33
  %v306 = vunpack.c.l.b16 %v34
  %v307 = vunpack.c.l.b16 %v35
  %v308 = vunpack.c.l.b16 %v36
  %v309 = vunpack.c.l.b16 %v37
  %v310 = vunpack.c.l.b16 %v38
  %v311 = vunpack.c.l.b16 %v39
  %v312 = vunpack.c.l.b16 %v40
  %v313 = vunpack.c.l.b16 %v41
  %v314 = vunpack.c.l.b16 %v42
  %v315 = vunpack.c.l.b16 %v43
  %v316 = vunpack.c.l.b16 %v44
  %v317 = vunpack.c.l.b16 %v45
  %v318 = vunpack.c.l.b16 %v46
  %v319 = vpack.c.b16 %v288, %v287
  %v320 = vpack.c.b16 %v290, %v289
  %v321 = vpack.c.b16 %v292, %v291
  %v322 = vpack.c.b16 %v294, %v293
  %v323 = vpack.c.b16 %v296, %v295
  %v324 = vpack.c.b16 %v298, %v297
  %v325 = vpack.c.b16 %v300, %v299
  %v326 = vpack.c.b16 %v302, %v301
  %v327 = vpack.c.b16 %v304, %v303
  %v328 = vpack.c.b16 %v306, %v305
  %v329 = vpack.c.b16 %v308, %v307
  %v330 = vpack.c.b16 %v310, %v309
  %v331 = vpack.c.b16 %v312, %v311
  %v332 = vpack.c.b16 %v314, %v313
  %v333 = vpack.c.b16 %v316, %v315
  %v334 = vpack.c.b16 %v318, %v317
  %v367 = vunpack.c.l.b16 %v79
  %v368 = vunpack.c.l.b16 %v80
  %v369 = vunpack.c.l.b16 %v81
  %v370 = vunpack.c.l.b16 %v82
  %v371 = vunpack.c.l.b16 %v83
  %v372 = vunpack.c.l.b16 %v84
  %v373 = vunpack.c.l.b16 %v85
  %v374 = vunpack.c.l.b16 %v86
  %v375 = vunpack.c.l.b16 %v87
  %v376 = vunpack.c.l.b16 %v88
  %v377 = vunpack.c.l.b16 %v89
  %v378 = vunpack.c.l.b16 %v90
  %v379 = vunpack.c.l.b16 %v91
  %v380 = vunpack.c.l.b16 %v92
  %v381 = vunpack.c.l.b16 %v93
  %v382 = vunpack.c.l.b16 %v94
  %v383 = vpack.c.b16 %v368, %v367
  %v384 = vpack.c.b16 %v370, %v369
  %v385 = vpack.c.b16 %v372, %v371
  %v386 = vpack.c.b16 %v374, %v373
  %v387 = vpack.c.b16 %v376, %v375
  %v388 = vpack.c.b16 %v378, %v377
  %v389 = vpack.c.b16 %v380, %v379
  %v390 = vpack.c.b16 %v382, %v381
  %399 = vmatprep.subr.bf16.mxu0 0
  %400 = vmatpush1.bf16.msra.mxu0 %v390
  %401 = vmatprep.subr.bf16.mxu0 0
  %402 = vmatpush1.bf16.msra.mxu0 %v389
  %403 = vmatprep.subr.bf16.mxu0 0
  %404 = vmatpush1.bf16.msra.mxu0 %v388
  %405 = vmatprep.subr.bf16.mxu0 0
  %406 = vmatpush1.bf16.msra.mxu0 %v387
  %407 = vmatprep.subr.bf16.mxu0 0
  %408 = vmatpush1.bf16.msra.mxu0 %v386
  %409 = vmatprep.subr.bf16.mxu0 0
  %410 = vmatpush1.bf16.msra.mxu0 %v385
  %411 = vmatprep.subr.bf16.mxu0 0
  %412 = vmatpush1.bf16.msra.mxu0 %v384
  %413 = vmatprep.subr.bf16.mxu0 0
  %414 = vmatpush1.bf16.msra.mxu0 %v383
  %415 = vmatprep.subr.bf16.mxu0 0
  %416 = vmatpush2.bf16.msra.mxu0 0
  %417 = vmatprep.subr.bf16.mxu0 0
  %418 = vmatpush2.bf16.msra.mxu0 0
  %419 = vmatprep.subr.bf16.mxu0 0
  %420 = vmatpush2.bf16.msra.mxu0 0
  %421 = vmatprep.subr.bf16.mxu0 0
  %422 = vmatpush2.bf16.msra.mxu0 0
  %423 = vmatprep.subr.bf16.mxu0 0
  %424 = vmatpush2.bf16.msra.mxu0 0
  %425 = vmatprep.subr.bf16.mxu0 0
  %426 = vmatpush2.bf16.msra.mxu0 0
  %427 = vmatprep.subr.bf16.mxu0 0
  %428 = vmatpush2.bf16.msra.mxu0 0
  %429 = vmatprep.subr.bf16.mxu0 0
  %430 = vmatpush2.bf16.msra.mxu0 0
  %431 = vmatprep.mubr.bf16.mxu0 0
  %432 = vmatmul.mubr.bf16.gmra.mxu0 %v319
  %v433 = vpop.f32.mrf.mxu0
  %v434 = vadd.f32 %v98, %v433
  %v435 = vpop.f32.mrf.mxu0
  %v436 = vpop.f32.mrf.mxu0
  %v437 = vadd.f32 %v103, %v436
  %v438 = vpop.f32.mrf.mxu0
  %439 = vmatprep.mubr.bf16.mxu0 0
  %440 = vmatmul.mubr.bf16.gmra.mxu0 %v320
  %v441 = vpop.f32.mrf.mxu0
  %v442 = vadd.f32 %v108, %v441
  %v443 = vpop.f32.mrf.mxu0
  %v444 = vpop.f32.mrf.mxu0
  %v445 = vadd.f32 %v113, %v444
  %v446 = vpop.f32.mrf.mxu0
  %447 = vmatprep.mubr.bf16.mxu0 0
  %448 = vmatmul.mubr.bf16.gmra.mxu0 %v321
  %v449 = vpop.f32.mrf.mxu0
  %v450 = vadd.f32 %v118, %v449
  %v451 = vpop.f32.mrf.mxu0
  %v452 = vpop.f32.mrf.mxu0
  %v453 = vadd.f32 %v123, %v452
  %v454 = vpop.f32.mrf.mxu0
  %455 = vmatprep.mubr.bf16.mxu0 0
  %456 = vmatmul.mubr.bf16.gmra.mxu0 %v322
  %v457 = vpop.f32.mrf.mxu0
  %v458 = vadd.f32 %v128, %v457
  %v459 = vpop.f32.mrf.mxu0
  %v460 = vpop.f32.mrf.mxu0
  %v461 = vadd.f32 %v133, %v460
  %v462 = vpop.f32.mrf.mxu0
  %463 = vmatprep.mubr.bf16.mxu0 0
  %464 = vmatmul.mubr.bf16.gmra.mxu0 %v323
  %v465 = vpop.f32.mrf.mxu0
  %v466 = vadd.f32 %v138, %v465
  %v467 = vpop.f32.mrf.mxu0
  %v468 = vpop.f32.mrf.mxu0
  %v469 = vadd.f32 %v143, %v468
  %v470 = vpop.f32.mrf.mxu0
  %471 = vmatprep.mubr.bf16.mxu0 0
  %472 = vmatmul.mubr.bf16.gmra.mxu0 %v324
  %v473 = vpop.f32.mrf.mxu0
  %v474 = vadd.f32 %v148, %v473
  %v475 = vpop.f32.mrf.mxu0
  %v476 = vpop.f32.mrf.mxu0
  %v477 = vadd.f32 %v153, %v476
  %v478 = vpop.f32.mrf.mxu0
  %479 = vmatprep.mubr.bf16.mxu0 0
  %480 = vmatmul.mubr.bf16.gmra.mxu0 %v325
  %v481 = vpop.f32.mrf.mxu0
  %v482 = vadd.f32 %v158, %v481
  %v483 = vpop.f32.mrf.mxu0
  %v484 = vpop.f32.mrf.mxu0
  %v485 = vadd.f32 %v163, %v484
  %v486 = vpop.f32.mrf.mxu0
  %487 = vmatprep.mubr.bf16.mxu0 0
  %488 = vmatmul.mubr.bf16.gmra.mxu0 %v326
  %v489 = vpop.f32.mrf.mxu0
  %v490 = vadd.f32 %v168, %v489
  %v491 = vpop.f32.mrf.mxu0
  %v492 = vpop.f32.mrf.mxu0
  %v493 = vadd.f32 %v173, %v492
  %v494 = vpop.f32.mrf.mxu0
  %495 = vmatprep.mubr.bf16.mxu0 0
  %496 = vmatmul.mubr.bf16.gmra.mxu0 %v327
  %v497 = vpop.f32.mrf.mxu0
  %v498 = vadd.f32 %v178, %v497
  %v499 = vpop.f32.mrf.mxu0
  %v500 = vpop.f32.mrf.mxu0
  %v501 = vadd.f32 %v183, %v500
  %v502 = vpop.f32.mrf.mxu0
  %503 = vmatprep.mubr.bf16.mxu0 0
  %504 = vmatmul.mubr.bf16.gmra.mxu0 %v328
  %v505 = vpop.f32.mrf.mxu0
  %v506 = vadd.f32 %v188, %v505
  %v507 = vpop.f32.mrf.mxu0
  %v508 = vpop.f32.mrf.mxu0
  %v509 = vadd.f32 %v193, %v508
  %v510 = vpop.f32.mrf.mxu0
  %511 = vmatprep.mubr.bf16.mxu0 0
  %512 = vmatmul.mubr.bf16.gmra.mxu0 %v329
  %v513 = vpop.f32.mrf.mxu0
  %v514 = vadd.f32 %v198, %v513
  %v515 = vpop.f32.mrf.mxu0
  %v516 = vpop.f32.mrf.mxu0
  %v517 = vadd.f32 %v203, %v516
  %v518 = vpop.f32.mrf.mxu0
  %519 = vmatprep.mubr.bf16.mxu0 0
  %520 = vmatmul.mubr.bf16.gmra.mxu0 %v330
  %v521 = vpop.f32.mrf.mxu0
  %v522 = vadd.f32 %v208, %v521
  %v523 = vpop.f32.mrf.mxu0
  %v524 = vpop.f32.mrf.mxu0
  %v525 = vadd.f32 %v213, %v524
  %v526 = vpop.f32.mrf.mxu0
  %527 = vmatprep.mubr.bf16.mxu0 0
  %528 = vmatmul.mubr.bf16.gmra.mxu0 %v331
  %v529 = vpop.f32.mrf.mxu0
  %v530 = vadd.f32 %v218, %v529
  %v531 = vpop.f32.mrf.mxu0
  %v532 = vpop.f32.mrf.mxu0
  %v533 = vadd.f32 %v223, %v532
  %v534 = vpop.f32.mrf.mxu0
  %535 = vmatprep.mubr.bf16.mxu0 0
  %536 = vmatmul.mubr.bf16.gmra.mxu0 %v332
  %v537 = vpop.f32.mrf.mxu0
  %v538 = vadd.f32 %v228, %v537
  %v539 = vpop.f32.mrf.mxu0
  %v540 = vpop.f32.mrf.mxu0
  %v541 = vadd.f32 %v233, %v540
  %v542 = vpop.f32.mrf.mxu0
  %543 = vmatprep.mubr.bf16.mxu0 0
  %544 = vmatmul.mubr.bf16.gmra.mxu0 %v333
  %v545 = vpop.f32.mrf.mxu0
  %v546 = vadd.f32 %v238, %v545
  %v547 = vpop.f32.mrf.mxu0
  %v548 = vpop.f32.mrf.mxu0
  %v549 = vadd.f32 %v243, %v548
  %v550 = vpop.f32.mrf.mxu0
  %551 = vmatprep.mubr.bf16.mxu0 0
  %552 = vmatmul.mubr.bf16.gmra.mxu0 %v334
  %v553 = vpop.f32.mrf.mxu0
  %v554 = vadd.f32 %v248, %v553
  %v555 = vpop.f32.mrf.mxu0
  %v556 = vpop.f32.mrf.mxu0
  %v557 = vadd.f32 %v253, %v556
  %v558 = vpop.f32.mrf.mxu0
  %559 = vdwg.mxu0
  %v560 = vmax.f32 %v434, 0.0
  %v561 = vmax.f32 %v437, 0.0
  %v562 = vmax.f32 %v442, 0.0
  %v563 = vmax.f32 %v445, 0.0
  %v564 = vmax.f32 %v450, 0.0
  %v565 = vmax.f32 %v453, 0.0
  %v566 = vmax.f32 %v458, 0.0
  %v567 = vmax.f32 %v461, 0.0
  %v568 = vmax.f32 %v466, 0.0
  %v569 = vmax.f32 %v469, 0.0
  %v570 = vmax.f32 %v474, 0.0
  %v571 = vmax.f32 %v477, 0.0
  %v572 = vmax.f32 %v482, 0.0
  %v573 = vmax.f32 %v485, 0.0
  %v574 = vmax.f32 %v490, 0.0
  %v575 = vmax.f32 %v493, 0.0
  %v576 = vmax.f32 %v498, 0.0
  %v577 = vmax.f32 %v501, 0.0
  %v578 = vmax.f32 %v506, 0.0
  %v579 = vmax.f32 %v509, 0.0
  %v580 = vmax.f32 %v514, 0.0
  %v581 = vmax.f32 %v517, 0.0
  %v582 = vmax.f32 %v522, 0.0
  %v583 = vmax.f32 %v525, 0.0
  %v584 = vmax.f32 %v530, 0.0
  %v585 = vmax.f32 %v533, 0.0
  %v586 = vmax.f32 %v538, 0.0
  %v587 = vmax.f32 %v541, 0.0
  %v588 = vmax.f32 %v546, 0.0
  %v589 = vmax.f32 %v549, 0.0
  %v590 = vmax.f32 %v554, 0.0
  %v591 = vmax.f32 %v557, 0.0
  %vm592 = vcmask 523264
  %593 = vst.msk [vmem:[%s3] sm:$0xff] %vm592, %v560
  %594 = vst.msk [vmem:[%s3 + $0x8] sm:$0xff] %vm592, %v561
  %595 = vst.msk [vmem:[%s3 + $0x10] sm:$0xff] %vm592, %v562
  %596 = vst.msk [vmem:[%s3 + $0x18] sm:$0xff] %vm592, %v563
  %597 = vst.msk [vmem:[%s3 + $0x20] sm:$0xff] %vm592, %v564
  %598 = vst.msk [vmem:[%s3 + $0x28] sm:$0xff] %vm592, %v565
  %599 = vst.msk [vmem:[%s3 + $0x30] sm:$0xff] %vm592, %v566
  %600 = vst.msk [vmem:[%s3 + $0x38] sm:$0xff] %vm592, %v567
  %601 = vst.msk [vmem:[%s3 + $0x40] sm:$0xff] %vm592, %v568
  %602 = vst.msk [vmem:[%s3 + $0x48] sm:$0xff] %vm592, %v569
  %603 = vst.msk [vmem:[%s3 + $0x50] sm:$0xff] %vm592, %v570
  %604 = vst.msk [vmem:[%s3 + $0x58] sm:$0xff] %vm592, %v571
  %605 = vst.msk [vmem:[%s3 + $0x60] sm:$0xff] %vm592, %v572
  %606 = vst.msk [vmem:[%s3 + $0x68] sm:$0xff] %vm592, %v573
  %607 = vst.msk [vmem:[%s3 + $0x70] sm:$0xff] %vm592, %v574
  %608 = vst.msk [vmem:[%s3 + $0x78] sm:$0xff] %vm592, %v575
  %609 = vst.msk [vmem:[%s3 + $0x80] sm:$0xff] %vm592, %v576
  %610 = vst.msk [vmem:[%s3 + $0x88] sm:$0xff] %vm592, %v577
  %611 = vst.msk [vmem:[%s3 + $0x90] sm:$0xff] %vm592, %v578
  %612 = vst.msk [vmem:[%s3 + $0x98] sm:$0xff] %vm592, %v579
  %613 = vst.msk [vmem:[%s3 + $0xa0] sm:$0xff] %vm592, %v580
  %614 = vst.msk [vmem:[%s3 + $0xa8] sm:$0xff] %vm592, %v581
  %615 = vst.msk [vmem:[%s3 + $0xb0] sm:$0xff] %vm592, %v582
  %616 = vst.msk [vmem:[%s3 + $0xb8] sm:$0xff] %vm592, %v583
  %617 = vst.msk [vmem:[%s3 + $0xc0] sm:$0xff] %vm592, %v584
  %618 = vst.msk [vmem:[%s3 + $0xc8] sm:$0xff] %vm592, %v585
  %619 = vst.msk [vmem:[%s3 + $0xd0] sm:$0xff] %vm592, %v586
  %620 = vst.msk [vmem:[%s3 + $0xd8] sm:$0xff] %vm592, %v587
  %621 = vst.msk [vmem:[%s3 + $0xe0] sm:$0xff] %vm592, %v588
  %622 = vst.msk [vmem:[%s3 + $0xe8] sm:$0xff] %vm592, %v589
  %623 = vst.msk [vmem:[%s3 + $0xf0] sm:$0xff] %vm592, %v590
  %624 = vst.msk [vmem:[%s3 + $0xf8] sm:$0xff] %vm592, %v591
  %s625 = scalar_lea.vmem %s0, 64
  %v626 = vld [vmem:[%s625] sm:$0xf]
  %v627 = vld [vmem:[%s625 + $0x4] sm:$0xf]
  %v628 = vld [vmem:[%s625 + $0x8] sm:$0xf]
  %v629 = vld [vmem:[%s625 + $0xc] sm:$0xf]
  %v630 = vld [vmem:[%s625 + $0x10] sm:$0xf]
  %v631 = vld [vmem:[%s625 + $0x14] sm:$0xf]
  %v632 = vld [vmem:[%s625 + $0x18] sm:$0xf]
  %v633 = vld [vmem:[%s625 + $0x1c] sm:$0xf]
  %v634 = vld [vmem:[%s625 + $0x20] sm:$0xf]
  %v635 = vld [vmem:[%s625 + $0x24] sm:$0xf]
  %v636 = vld [vmem:[%s625 + $0x28] sm:$0xf]
  %v637 = vld [vmem:[%s625 + $0x2c] sm:$0xf]
  %v638 = vld [vmem:[%s625 + $0x30] sm:$0xf]
  %v639 = vld [vmem:[%s625 + $0x34] sm:$0xf]
  %v640 = vld [vmem:[%s625 + $0x38] sm:$0xf]
  %v641 = vld [vmem:[%s625 + $0x3c] sm:$0xf]
  %v658 = vunpack.c.l.b16 %v626
  %v659 = vunpack.c.l.b16 %v627
  %v660 = vunpack.c.l.b16 %v628
  %v661 = vunpack.c.l.b16 %v629
  %v662 = vunpack.c.l.b16 %v630
  %v663 = vunpack.c.l.b16 %v631
  %v664 = vunpack.c.l.b16 %v632
  %v665 = vunpack.c.l.b16 %v633
  %v666 = vunpack.c.l.b16 %v634
  %v667 = vunpack.c.l.b16 %v635
  %v668 = vunpack.c.l.b16 %v636
  %v669 = vunpack.c.l.b16 %v637
  %v670 = vunpack.c.l.b16 %v638
  %v671 = vunpack.c.l.b16 %v639
  %v672 = vunpack.c.l.b16 %v640
  %v673 = vunpack.c.l.b16 %v641
  %v674 = vpack.c.b16 %v659, %v658
  %v675 = vpack.c.b16 %v661, %v660
  %v676 = vpack.c.b16 %v663, %v662
  %v677 = vpack.c.b16 %v665, %v664
  %v678 = vpack.c.b16 %v667, %v666
  %v679 = vpack.c.b16 %v669, %v668
  %v680 = vpack.c.b16 %v671, %v670
  %v681 = vpack.c.b16 %v673, %v672
  %690 = vmatprep.subr.bf16.mxu0 0
  %691 = vmatpush1.bf16.msra.mxu0 %v681
  %692 = vmatprep.subr.bf16.mxu0 0
  %693 = vmatpush1.bf16.msra.mxu0 %v680
  %694 = vmatprep.subr.bf16.mxu0 0
  %695 = vmatpush1.bf16.msra.mxu0 %v679
  %696 = vmatprep.subr.bf16.mxu0 0
  %697 = vmatpush1.bf16.msra.mxu0 %v678
  %698 = vmatprep.subr.bf16.mxu0 0
  %699 = vmatpush1.bf16.msra.mxu0 %v677
  %700 = vmatprep.subr.bf16.mxu0 0
  %701 = vmatpush1.bf16.msra.mxu0 %v676
  %702 = vmatprep.subr.bf16.mxu0 0
  %703 = vmatpush1.bf16.msra.mxu0 %v675
  %704 = vmatprep.subr.bf16.mxu0 0
  %705 = vmatpush1.bf16.msra.mxu0 %v674
  %706 = vmatprep.subr.bf16.mxu0 0
  %707 = vmatpush2.bf16.msra.mxu0 0
  %708 = vmatprep.subr.bf16.mxu0 0
  %709 = vmatpush2.bf16.msra.mxu0 0
  %710 = vmatprep.subr.bf16.mxu0 0
  %711 = vmatpush2.bf16.msra.mxu0 0
  %712 = vmatprep.subr.bf16.mxu0 0
  %713 = vmatpush2.bf16.msra.mxu0 0
  %714 = vmatprep.subr.bf16.mxu0 0
  %715 = vmatpush2.bf16.msra.mxu0 0
  %716 = vmatprep.subr.bf16.mxu0 0
  %717 = vmatpush2.bf16.msra.mxu0 0
  %718 = vmatprep.subr.bf16.mxu0 0
  %719 = vmatpush2.bf16.msra.mxu0 0
  %720 = vmatprep.subr.bf16.mxu0 0
  %721 = vmatpush2.bf16.msra.mxu0 0
  %722 = vmatprep.mubr.bf16.mxu0 0
  %723 = vmatmul.mubr.bf16.gmra.mxu0 %v319
  %v724 = vpop.f32.mrf.mxu0
  %v725 = vadd.f32 %v98, %v724
  %v726 = vpop.f32.mrf.mxu0
  %v727 = vpop.f32.mrf.mxu0
  %v728 = vadd.f32 %v103, %v727
  %v729 = vpop.f32.mrf.mxu0
  %730 = vmatprep.mubr.bf16.mxu0 0
  %731 = vmatmul.mubr.bf16.gmra.mxu0 %v320
  %v732 = vpop.f32.mrf.mxu0
  %v733 = vadd.f32 %v108, %v732
  %v734 = vpop.f32.mrf.mxu0
  %v735 = vpop.f32.mrf.mxu0
  %v736 = vadd.f32 %v113, %v735
  %v737 = vpop.f32.mrf.mxu0
  %738 = vmatprep.mubr.bf16.mxu0 0
  %739 = vmatmul.mubr.bf16.gmra.mxu0 %v321
  %v740 = vpop.f32.mrf.mxu0
  %v741 = vadd.f32 %v118, %v740
  %v742 = vpop.f32.mrf.mxu0
  %v743 = vpop.f32.mrf.mxu0
  %v744 = vadd.f32 %v123, %v743
  %v745 = vpop.f32.mrf.mxu0
  %746 = vmatprep.mubr.bf16.mxu0 0
  %747 = vmatmul.mubr.bf16.gmra.mxu0 %v322
  %v748 = vpop.f32.mrf.mxu0
  %v749 = vadd.f32 %v128, %v748
  %v750 = vpop.f32.mrf.mxu0
  %v751 = vpop.f32.mrf.mxu0
  %v752 = vadd.f32 %v133, %v751
  %v753 = vpop.f32.mrf.mxu0
  %754 = vmatprep.mubr.bf16.mxu0 0
  %755 = vmatmul.mubr.bf16.gmra.mxu0 %v323
  %v756 = vpop.f32.mrf.mxu0
  %v757 = vadd.f32 %v138, %v756
  %v758 = vpop.f32.mrf.mxu0
  %v759 = vpop.f32.mrf.mxu0
  %v760 = vadd.f32 %v143, %v759
  %v761 = vpop.f32.mrf.mxu0
  %762 = vmatprep.mubr.bf16.mxu0 0
  %763 = vmatmul.mubr.bf16.gmra.mxu0 %v324
  %v764 = vpop.f32.mrf.mxu0
  %v765 = vadd.f32 %v148, %v764
  %v766 = vpop.f32.mrf.mxu0
  %v767 = vpop.f32.mrf.mxu0
  %v768 = vadd.f32 %v153, %v767
  %v769 = vpop.f32.mrf.mxu0
  %770 = vmatprep.mubr.bf16.mxu0 0
  %771 = vmatmul.mubr.bf16.gmra.mxu0 %v325
  %v772 = vpop.f32.mrf.mxu0
  %v773 = vadd.f32 %v158, %v772
  %v774 = vpop.f32.mrf.mxu0
  %v775 = vpop.f32.mrf.mxu0
  %v776 = vadd.f32 %v163, %v775
  %v777 = vpop.f32.mrf.mxu0
  %778 = vmatprep.mubr.bf16.mxu0 0
  %779 = vmatmul.mubr.bf16.gmra.mxu0 %v326
  %v780 = vpop.f32.mrf.mxu0
  %v781 = vadd.f32 %v168, %v780
  %v782 = vpop.f32.mrf.mxu0
  %v783 = vpop.f32.mrf.mxu0
  %v784 = vadd.f32 %v173, %v783
  %v785 = vpop.f32.mrf.mxu0
  %786 = vmatprep.mubr.bf16.mxu0 0
  %787 = vmatmul.mubr.bf16.gmra.mxu0 %v327
  %v788 = vpop.f32.mrf.mxu0
  %v789 = vadd.f32 %v178, %v788
  %v790 = vpop.f32.mrf.mxu0
  %v791 = vpop.f32.mrf.mxu0
  %v792 = vadd.f32 %v183, %v791
  %v793 = vpop.f32.mrf.mxu0
  %794 = vmatprep.mubr.bf16.mxu0 0
  %795 = vmatmul.mubr.bf16.gmra.mxu0 %v328
  %v796 = vpop.f32.mrf.mxu0
  %v797 = vadd.f32 %v188, %v796
  %v798 = vpop.f32.mrf.mxu0
  %v799 = vpop.f32.mrf.mxu0
  %v800 = vadd.f32 %v193, %v799
  %v801 = vpop.f32.mrf.mxu0
  %802 = vmatprep.mubr.bf16.mxu0 0
  %803 = vmatmul.mubr.bf16.gmra.mxu0 %v329
  %v804 = vpop.f32.mrf.mxu0
  %v805 = vadd.f32 %v198, %v804
  %v806 = vpop.f32.mrf.mxu0
  %v807 = vpop.f32.mrf.mxu0
  %v808 = vadd.f32 %v203, %v807
  %v809 = vpop.f32.mrf.mxu0
  %810 = vmatprep.mubr.bf16.mxu0 0
  %811 = vmatmul.mubr.bf16.gmra.mxu0 %v330
  %v812 = vpop.f32.mrf.mxu0
  %v813 = vadd.f32 %v208, %v812
  %v814 = vpop.f32.mrf.mxu0
  %v815 = vpop.f32.mrf.mxu0
  %v816 = vadd.f32 %v213, %v815
  %v817 = vpop.f32.mrf.mxu0
  %818 = vmatprep.mubr.bf16.mxu0 0
  %819 = vmatmul.mubr.bf16.gmra.mxu0 %v331
  %v820 = vpop.f32.mrf.mxu0
  %v821 = vadd.f32 %v218, %v820
  %v822 = vpop.f32.mrf.mxu0
  %v823 = vpop.f32.mrf.mxu0
  %v824 = vadd.f32 %v223, %v823
  %v825 = vpop.f32.mrf.mxu0
  %826 = vmatprep.mubr.bf16.mxu0 0
  %827 = vmatmul.mubr.bf16.gmra.mxu0 %v332
  %v828 = vpop.f32.mrf.mxu0
  %v829 = vadd.f32 %v228, %v828
  %v830 = vpop.f32.mrf.mxu0
  %v831 = vpop.f32.mrf.mxu0
  %v832 = vadd.f32 %v233, %v831
  %v833 = vpop.f32.mrf.mxu0
  %834 = vmatprep.mubr.bf16.mxu0 0
  %835 = vmatmul.mubr.bf16.gmra.mxu0 %v333
  %v836 = vpop.f32.mrf.mxu0
  %v837 = vadd.f32 %v238, %v836
  %v838 = vpop.f32.mrf.mxu0
  %v839 = vpop.f32.mrf.mxu0
  %v840 = vadd.f32 %v243, %v839
  %v841 = vpop.f32.mrf.mxu0
  %842 = vmatprep.mubr.bf16.mxu0 0
  %843 = vmatmul.mubr.bf16.gmra.mxu0 %v334
  %v844 = vpop.f32.mrf.mxu0
  %v845 = vadd.f32 %v248, %v844
  %v846 = vpop.f32.mrf.mxu0
  %v847 = vpop.f32.mrf.mxu0
  %v848 = vadd.f32 %v253, %v847
  %v849 = vpop.f32.mrf.mxu0
  %850 = vdwg.mxu0
  %v851 = vmax.f32 %v725, 0.0
  %v852 = vmax.f32 %v728, 0.0
  %v853 = vmax.f32 %v733, 0.0
  %v854 = vmax.f32 %v736, 0.0
  %v855 = vmax.f32 %v741, 0.0
  %v856 = vmax.f32 %v744, 0.0
  %v857 = vmax.f32 %v749, 0.0
  %v858 = vmax.f32 %v752, 0.0
  %v859 = vmax.f32 %v757, 0.0
  %v860 = vmax.f32 %v760, 0.0
  %v861 = vmax.f32 %v765, 0.0
  %v862 = vmax.f32 %v768, 0.0
  %v863 = vmax.f32 %v773, 0.0
  %v864 = vmax.f32 %v776, 0.0
  %v865 = vmax.f32 %v781, 0.0
  %v866 = vmax.f32 %v784, 0.0
  %v867 = vmax.f32 %v789, 0.0
  %v868 = vmax.f32 %v792, 0.0
  %v869 = vmax.f32 %v797, 0.0
  %v870 = vmax.f32 %v800, 0.0
  %v871 = vmax.f32 %v805, 0.0
  %v872 = vmax.f32 %v808, 0.0
  %v873 = vmax.f32 %v813, 0.0
  %v874 = vmax.f32 %v816, 0.0
  %v875 = vmax.f32 %v821, 0.0
  %v876 = vmax.f32 %v824, 0.0
  %v877 = vmax.f32 %v829, 0.0
  %v878 = vmax.f32 %v832, 0.0
  %v879 = vmax.f32 %v837, 0.0
  %v880 = vmax.f32 %v840, 0.0
  %v881 = vmax.f32 %v845, 0.0
  %v882 = vmax.f32 %v848, 0.0
  %s883 = scalar_lea.vmem %s3, 256
  %884 = vst.msk [vmem:[%s883] sm:$0xff] %vm592, %v851
  %885 = vst.msk [vmem:[%s883 + $0x8] sm:$0xff] %vm592, %v852
  %886 = vst.msk [vmem:[%s883 + $0x10] sm:$0xff] %vm592, %v853
  %887 = vst.msk [vmem:[%s883 + $0x18] sm:$0xff] %vm592, %v854
  %888 = vst.msk [vmem:[%s883 + $0x20] sm:$0xff] %vm592, %v855
  %889 = vst.msk [vmem:[%s883 + $0x28] sm:$0xff] %vm592, %v856
  %890 = vst.msk [vmem:[%s883 + $0x30] sm:$0xff] %vm592, %v857
  %891 = vst.msk [vmem:[%s883 + $0x38] sm:$0xff] %vm592, %v858
  %892 = vst.msk [vmem:[%s883 + $0x40] sm:$0xff] %vm592, %v859
  %893 = vst.msk [vmem:[%s883 + $0x48] sm:$0xff] %vm592, %v860
  %894 = vst.msk [vmem:[%s883 + $0x50] sm:$0xff] %vm592, %v861
  %895 = vst.msk [vmem:[%s883 + $0x58] sm:$0xff] %vm592, %v862
  %896 = vst.msk [vmem:[%s883 + $0x60] sm:$0xff] %vm592, %v863
  %897 = vst.msk [vmem:[%s883 + $0x68] sm:$0xff] %vm592, %v864
  %898 = vst.msk [vmem:[%s883 + $0x70] sm:$0xff] %vm592, %v865
  %899 = vst.msk [vmem:[%s883 + $0x78] sm:$0xff] %vm592, %v866
  %900 = vst.msk [vmem:[%s883 + $0x80] sm:$0xff] %vm592, %v867
  %901 = vst.msk [vmem:[%s883 + $0x88] sm:$0xff] %vm592, %v868
  %902 = vst.msk [vmem:[%s883 + $0x90] sm:$0xff] %vm592, %v869
  %903 = vst.msk [vmem:[%s883 + $0x98] sm:$0xff] %vm592, %v870
  %904 = vst.msk [vmem:[%s883 + $0xa0] sm:$0xff] %vm592, %v871
  %905 = vst.msk [vmem:[%s883 + $0xa8] sm:$0xff] %vm592, %v872
  %906 = vst.msk [vmem:[%s883 + $0xb0] sm:$0xff] %vm592, %v873
  %907 = vst.msk [vmem:[%s883 + $0xb8] sm:$0xff] %vm592, %v874
  %908 = vst.msk [vmem:[%s883 + $0xc0] sm:$0xff] %vm592, %v875
  %909 = vst.msk [vmem:[%s883 + $0xc8] sm:$0xff] %vm592, %v876
  %910 = vst.msk [vmem:[%s883 + $0xd0] sm:$0xff] %vm592, %v877
  %911 = vst.msk [vmem:[%s883 + $0xd8] sm:$0xff] %vm592, %v878
  %912 = vst.msk [vmem:[%s883 + $0xe0] sm:$0xff] %vm592, %v879
  %913 = vst.msk [vmem:[%s883 + $0xe8] sm:$0xff] %vm592, %v880
  %914 = vst.msk [vmem:[%s883 + $0xf0] sm:$0xff] %vm592, %v881
  %915 = vst.msk [vmem:[%s883 + $0xf8] sm:$0xff] %vm592, %v882
  // Predicated region
  $region14: #{conv_layer_forward.1} parent=0 // pred_check
    _
  $region15: #{conv_layer_forward.1} parent=0 // pred_check_branch
    %917 = sbr.rel (0) target = $region17
  $region16: #{conv_layer_forward.1} parent=0 // pred_region
    _
  $region17: #{conv_layer_forward.1} parent=0 // pred_fallthru
    _
  // Predicated region
  $region18: #{conv_layer_forward.1} parent=0 // pred_check
    _
  $region19: #{conv_layer_forward.1} parent=0 // pred_check_branch
    %919 = sbr.rel (0) target = $region21
  $region20: #{conv_layer_forward.1} parent=0 // pred_region
    _
  $region21: #{conv_layer_forward.1} parent=0 // pred_fallthru
    _

</llo_original>
